<compile_context>
chip_gen: v6e
topology: v6e:2x2x1
jax: 0.10.0
libtpu: 0.0.40
codegen_flags: <defaults>
</compile_context>

<pallas_src>
import functools

import jax
import jax.numpy as jnp
from jax.experimental import pallas as pl
from jax.experimental.pallas import tpu as pltpu

TAO = 4                       # pyramid levels -> pool sizes 1, 2, 4, 8
LAMBDA_ZHAT = 3.0
LAMBDA_WEIGHT_REG = 0.0005
# (nn.MaxPool2d has no parameters, so there are no weights to initialize.)


def _pyramid_sse_kernel(mask_ref, *refs, tao, w_dim, npred):
    """Per-block scalar SSE of (maxpool(pred) - maxpool(target))**2 per level.

    refs = (pred_ref_0, ..., pred_ref_{npred-1}, target_ref, out_ref)
      pred/target refs : (TB, L) with L = h_chunk * W (one flattened chunk/row)
      mask_ref         : (tao, 1, L) window-start masks (0/1, f32)
      out_ref          : (1, npred*tao, 1, 1) per-block scalar partial sums
    """
    pred_refs = refs[:npred]
    tgt_ref = refs[npred]
    out_ref = refs[npred + 1]

    tgt = tgt_ref[...].astype(jnp.float32)                      # (TB, L)
    running = [r[...].astype(jnp.float32) for r in pred_refs] + [tgt]
    tb, l = tgt.shape
    tg = tb // 8

    for i in range(tao):
        if i > 0:
            k = 1 << (i - 1)
            # Double the running window max from k to 2k: once along the
            # in-chunk column direction (lane shift k) and once along the
            # in-chunk row direction (lane shift k * W).  Pure XLU rolls.
            for shift in (l - k, l - k * w_dim):
                running = [jnp.maximum(x, pltpu.roll(x, shift=shift, axis=1))
                           for x in running]
            # Hoist the sublane broadcast of the mask out of the pred loop.
            m = jnp.broadcast_to(mask_ref[i], (8, l))            # (8, L)
        t = running[-1]
        for j in range(npred):
            d = running[j] - t
            # Reduce TB rows -> 8 sublane rows with pure VPU adds (the reshape
            # is tile-aligned, i.e. a free relayout).
            part = jnp.sum((d * d).reshape(tg, 8, l), axis=0)    # (8, L)
            if i > 0:                      # level 0 mask is all-ones: skip mul
                part = part * m
            # Finish the reduction in-kernel: one scalar per (pred, level).
            out_ref[0, j * tao + i] = jnp.sum(part, keepdims=True)  # (1, 1)


def _round_up(x, m):
    return (x + m - 1) // m * m


def _vmem_capacity_bytes():
    try:
        info = pltpu.get_tpu_info()
        cap = getattr(info, "vmem_capacity_bytes", None)
        if cap:
            return int(cap)
    except Exception:
        pass
    return 64 * 1024 * 1024    # assume smallest (v7x-sized) VMEM if unknown


def _rows_per_chunk(h, w, s_max, max_lane_elems):
    """Largest multiple of s_max dividing h with hr * w <= max_lane_elems."""
    best = s_max
    q = h // s_max
    for m in range(1, q + 1):
        if q % m == 0 and (s_max * m) * w <= max_lane_elems:
            best = s_max * m
    return best


def _pyramid_mse_losses(preds, target, tao=TAO, input_cast_dtype=None,
                        max_lane_elems=None):
    """For each pred: sum_i mse_loss(maxpool_{2**i}(pred), maxpool_{2**i}(target))."""
    npred = len(preds)
    n, c, h, w = target.shape
    for p in preds:
        assert p.shape == target.shape
    s_max = 1 << (tao - 1)
    assert h % s_max == 0 and w % s_max == 0

    # ---- generation-aware VMEM budget -------------------------------------
    vmem_cap = _vmem_capacity_bytes()
    if vmem_cap >= 96 * 1024 * 1024:          # v5e / v6e: 128 MiB physical VMEM
        per_tensor_budget = 3 * 1024 * 1024   # bigger tiles: less per-step overhead
        vmem_limit = 64 * 1024 * 1024
    else:                                     # v7x (64 MiB physical) or unknown
        per_tensor_budget = 3 * 1024 * 1024 // 2
        vmem_limit = 48 * 1024 * 1024

    # ---- intra-plane chunking along H --------------------------------------
    # Each (hr, W) slab becomes one lane-dense row of lr = hr*W elements.  hr is
    # a multiple of 2**(tao-1), so every aligned pool window lies entirely in
    # one chunk and the in-chunk window-start mask equals the global one.
    if max_lane_elems is None:
        max_lane_elems = per_tensor_budget // (8 * 4)   # TB >= 8 must still fit
    hr = _rows_per_chunk(h, w, s_max, max_lane_elems)
    # TODO(synk): if even an (s_max, W) chunk exceeds the budget (huge W),
    # additionally split along W; not needed for the shapes this module targets.
    lr = hr * w
    rows = n * c * (h // hr)

    # ---- block sizing (chunk-rows per grid step) ----------------------------
    tb_cap = max(8, (per_tensor_budget // (lr * 4)) // 8 * 8)
    rows_p8 = _round_up(rows, 8)
    tb = min(tb_cap, rows_p8)
    if rows_p8 >= 16 and tb >= rows_p8:
        # Would otherwise be a single grid step: split so the "parallel" grid
        # axis can shard across both v7x TensorCores (harmless on v5e/v6e).
        tb = _round_up((rows_p8 + 1) // 2, 8)
    rows_pad = _round_up(rows, tb)
    nblk = rows_pad // tb

    def prep(x):
        if input_cast_dtype is not None:
            x = x.astype(input_cast_dtype)    # e.g. bf16 on HBM-bound v5e
        x2 = x.reshape(rows, lr)              # lane-dense flatten, free reshape
        if rows_pad > rows:                   # zero rows contribute zero SSE
            x2 = jnp.pad(x2, ((0, rows_pad - rows), (0, 0)))
        return x2

    arrs = [prep(p) for p in preds] + [prep(target)]

    # Window-start masks, one lane-dense row per level: lane -> (row, col).
    # (lr is a multiple of 128 for the intended shapes; if not, the kernel is
    #  still correct, just slower due to masked stores / unaligned rolls.)
    lane = jnp.arange(lr, dtype=jnp.int32)
    rr, cc = lane // w, lane % w
    mask = jnp.stack([
        (((rr % (1 << i)) == 0) & ((cc % (1 << i)) == 0)).astype(jnp.float32)
        for i in range(tao)
    ])[:, None, :]                            # (tao, 1, lr)

    data_spec = pl.BlockSpec((tb, lr), lambda g: (g, 0))
    partials = pl.pallas_call(
        functools.partial(_pyramid_sse_kernel, tao=tao, w_dim=w, npred=npred),
        out_shape=jax.ShapeDtypeStruct((nblk, npred * tao, 1, 1), jnp.float32),
        grid=(nblk,),
        in_specs=[pl.BlockSpec((tao, 1, lr), lambda g: (0, 0, 0))]
                 + [data_spec] * (npred + 1),
        out_specs=pl.BlockSpec((1, npred * tao, 1, 1), lambda g: (g, 0, 0, 0)),
        compiler_params=pltpu.CompilerParams(
            dimension_semantics=("parallel",),   # independent blocks -> megacore OK
            vmem_limit_bytes=vmem_limit,
        ),
    )(mask, *arrs)

    sse = jnp.sum(partials[:, :, 0, 0], axis=0).reshape(npred, tao)   # (npred, tao)
    counts = jnp.array([n * c * (h >> i) * (w >> i) for i in range(tao)],
                       jnp.float32)
    return jnp.sum(sse / counts[None, :], axis=1)                     # (npred,)


def snow_loss(y_hat, y_prime, z_hat, y, z, weight_reg,
              lambda_zhat=LAMBDA_ZHAT, tao=TAO,
              lambda_weight_reg=LAMBDA_WEIGHT_REG,
              input_cast_dtype=None, max_lane_elems=None):
    # Fused pass: y is read from HBM and max-pooled once for both y_hat and y_prime.
    loss_y = _pyramid_mse_losses([y_hat, y_prime], y, tao,
                                 input_cast_dtype=input_cast_dtype,
                                 max_lane_elems=max_lane_elems)       # (2,)
    loss_z = _pyramid_mse_losses([z_hat], z, tao,
                                 input_cast_dtype=input_cast_dtype,
                                 max_lane_elems=max_lane_elems)       # (1,)
    # TODO(synk): low priority — fold the small z branch into the same
    # pallas_call (per-plane group id via scalar prefetch) to save one launch.
    return (loss_y[0] + loss_y[1] + lambda_zhat * loss_z[0]
            + lambda_weight_reg * weight_reg)


# ---------------- pure-JAX reference (for correctness check only) ----------------
def _maxpool_ref(x, s):
    n, c, h, w = x.shape
    return x.reshape(n, c, h // s, s, w // s, s).max(axis=(3, 5))


def _pyramid_mse_ref(pred, target, tao=TAO):
    total = 0.0
    for i in range(tao):
        s = 2 ** i
        total = total + jnp.mean((_maxpool_ref(pred, s) - _maxpool_ref(target, s)) ** 2)
    return total


def snow_loss_ref(y_hat, y_prime, z_hat, y, z, weight_reg):
    return (_pyramid_mse_ref(y_hat, y) + _pyramid_mse_ref(y_prime, y)
            + LAMBDA_ZHAT * _pyramid_mse_ref(z_hat, z)
            + LAMBDA_WEIGHT_REG * weight_reg)


if __name__ == "__main__":
    key = jax.random.PRNGKey(0)

    def check(n, c, h, w, max_lane_elems=None):
        k1, k2, k3, k4, k5, k6 = jax.random.split(jax.random.fold_in(key, h), 6)
        y_hat = jax.random.normal(k1, (n, c, h, w), jnp.float32)
        y_prime = jax.random.normal(k2, (n, c, h, w), jnp.float32)
        y = jax.random.normal(k3, (n, c, h, w), jnp.float32)
        z_hat = jax.random.normal(k4, (n, 1, h, w), jnp.float32)
        z = jax.random.normal(k5, (n, 1, h, w), jnp.float32)
        # synthetic scalar weight-regularization term (sum of squared "weights")
        weight_reg = jnp.sum(jax.random.normal(k6, (8,), jnp.float32) ** 2)

        fn = jax.jit(functools.partial(snow_loss, max_lane_elems=max_lane_elems))
        out = jax.block_until_ready(fn(y_hat, y_prime, z_hat, y, z, weight_reg))
        ref = snow_loss_ref(y_hat, y_prime, z_hat, y, z, weight_reg)
        assert jnp.allclose(out, ref, rtol=1e-5, atol=1e-4), (float(out), float(ref))

    # Small shape from the module spec (single block per call).
    check(2, 4, 16, 16)
    # Larger plane with a forced small lane budget: exercises intra-plane
    # chunking (hr < H), multi-block grid, and the megacore split path.
    check(2, 4, 32, 32, max_lane_elems=16 * 32)

    print("KERNEL_OK")
</pallas_src>

<mosaic_0001>
module attributes {stable_mosaic.version = 11 : i64} {
  func.func @_pyramid_sse_kernel(%arg0: i32, %arg1: memref<4x1x256xf32, #tpu.memory_space<vmem>>, %arg2: memref<8x256xf32, #tpu.memory_space<vmem>>, %arg3: memref<8x256xf32, #tpu.memory_space<vmem>>, %arg4: memref<8x256xf32, #tpu.memory_space<vmem>>, %arg5: memref<1x8x1x1xf32, #tpu.memory_space<vmem>>) attributes {dimension_semantics = [#tpu.dimension_semantics<parallel>], iteration_bounds = array<i64: 1>, scalar_prefetch = 0 : i64, scratch_operands = 0 : i64, tpu.core_type = #tpu.core_type<tc>, window_params = [{pipeline_mode = #tpu.pipeline_mode<synchronous>, transform_indices = @transform_0, window_bounds = array<i64: 4, 1, 256>}, {transform_indices = @transform_1, window_bounds = array<i64: 8, 256>}, {transform_indices = @transform_2, window_bounds = array<i64: 8, 256>}, {transform_indices = @transform_3, window_bounds = array<i64: 8, 256>}, {transform_indices = @transform_4, window_bounds = array<i64: 1, 8, 1, 1>}]} {
    %c0 = arith.constant 0 : index
    %c0_0 = arith.constant 0 : index
    %0 = vector.load %arg4[%c0, %c0_0] : memref<8x256xf32, #tpu.memory_space<vmem>>, vector<8x256xf32>
    %c0_1 = arith.constant 0 : index
    %c0_2 = arith.constant 0 : index
    %1 = vector.load %arg2[%c0_1, %c0_2] : memref<8x256xf32, #tpu.memory_space<vmem>>, vector<8x256xf32>
    %c0_3 = arith.constant 0 : index
    %c0_4 = arith.constant 0 : index
    %2 = vector.load %arg3[%c0_3, %c0_4] : memref<8x256xf32, #tpu.memory_space<vmem>>, vector<8x256xf32>
    %3 = arith.subf %1, %0 : vector<8x256xf32>
    %4 = arith.mulf %3, %3 : vector<8x256xf32>
    %5 = vector.shape_cast %4 : vector<8x256xf32> to vector<1x8x256xf32>
    %cst = arith.constant dense<0.000000e+00> : vector<8x256xf32>
    %6 = vector.multi_reduction <add>, %5, %cst [0] : vector<1x8x256xf32> to vector<8x256xf32>
    %7 = vector.shape_cast %6 : vector<8x256xf32> to vector<1x8x256xf32>
    %cst_5 = arith.constant dense<0.000000e+00> : vector<1xf32>
    %8 = vector.multi_reduction <add>, %7, %cst_5 [1, 2] : vector<1x8x256xf32> to vector<1xf32>
    %9 = vector.shape_cast %8 : vector<1xf32> to vector<1x1x1xf32>
    %10 = vector.extract %9[0, 0, 0] : f32 from vector<1x1x1xf32>
    %11 = vector.broadcast %10 : f32 to vector<1x1xf32>
    %c0_6 = arith.constant 0 : index
    %c0_7 = arith.constant 0 : index
    %c0_8 = arith.constant 0 : index
    %c0_9 = arith.constant 0 : index
    %12 = vector.load %arg5[%c0_6, %c0_7, %c0_8, %c0_9] : memref<1x8x1x1xf32, #tpu.memory_space<vmem>>, vector<1x1x1x1xf32>
    %13 = vector.shape_cast %12 : vector<1x1x1x1xf32> to vector<1x1xf32>
    %14 = vector.shape_cast %11 : vector<1x1xf32> to vector<1x1x1x1xf32>
    tpu.vector_store %arg5[%c0_6, %c0_7, %c0_8, %c0_9], %14 {strides = array<i32>} : memref<1x8x1x1xf32, #tpu.memory_space<vmem>>, vector<1x1x1x1xf32>,
    %15 = arith.subf %2, %0 : vector<8x256xf32>
    %16 = arith.mulf %15, %15 : vector<8x256xf32>
    %17 = vector.shape_cast %16 : vector<8x256xf32> to vector<1x8x256xf32>
    %cst_10 = arith.constant dense<0.000000e+00> : vector<8x256xf32>
    %18 = vector.multi_reduction <add>, %17, %cst_10 [0] : vector<1x8x256xf32> to vector<8x256xf32>
    %19 = vector.shape_cast %18 : vector<8x256xf32> to vector<1x8x256xf32>
    %cst_11 = arith.constant dense<0.000000e+00> : vector<1xf32>
    %20 = vector.multi_reduction <add>, %19, %cst_11 [1, 2] : vector<1x8x256xf32> to vector<1xf32>
    %21 = vector.shape_cast %20 : vector<1xf32> to vector<1x1x1xf32>
    %22 = vector.extract %21[0, 0, 0] : f32 from vector<1x1x1xf32>
    %23 = vector.broadcast %22 : f32 to vector<1x1xf32>
    %c0_12 = arith.constant 0 : index
    %c4 = arith.constant 4 : index
    %c0_13 = arith.constant 0 : index
    %c0_14 = arith.constant 0 : index
    %24 = vector.load %arg5[%c0_12, %c4, %c0_13, %c0_14] : memref<1x8x1x1xf32, #tpu.memory_space<vmem>>, vector<1x1x1x1xf32>
    %25 = vector.shape_cast %24 : vector<1x1x1x1xf32> to vector<1x1xf32>
    %26 = vector.shape_cast %23 : vector<1x1xf32> to vector<1x1x1x1xf32>
    tpu.vector_store %arg5[%c0_12, %c4, %c0_13, %c0_14], %26 {strides = array<i32>} : memref<1x8x1x1xf32, #tpu.memory_space<vmem>>, vector<1x1x1x1xf32>,
    %c255_i32 = arith.constant 255 : i32
    %27 = tpu.dynamic_rotate %1 by %c255_i32 dim 1 : vector<8x256xf32>, i32 -> vector<8x256xf32>
    %28 = arith.maximumf %1, %27 : vector<8x256xf32>
    %c255_i32_15 = arith.constant 255 : i32
    %29 = tpu.dynamic_rotate %2 by %c255_i32_15 dim 1 : vector<8x256xf32>, i32 -> vector<8x256xf32>
    %30 = arith.maximumf %2, %29 : vector<8x256xf32>
    %c255_i32_16 = arith.constant 255 : i32
    %31 = tpu.dynamic_rotate %0 by %c255_i32_16 dim 1 : vector<8x256xf32>, i32 -> vector<8x256xf32>
    %32 = arith.maximumf %0, %31 : vector<8x256xf32>
    %c240_i32 = arith.constant 240 : i32
    %33 = tpu.dynamic_rotate %28 by %c240_i32 dim 1 : vector<8x256xf32>, i32 -> vector<8x256xf32>
    %34 = arith.maximumf %28, %33 : vector<8x256xf32>
    %c240_i32_17 = arith.constant 240 : i32
    %35 = tpu.dynamic_rotate %30 by %c240_i32_17 dim 1 : vector<8x256xf32>, i32 -> vector<8x256xf32>
    %36 = arith.maximumf %30, %35 : vector<8x256xf32>
    %c240_i32_18 = arith.constant 240 : i32
    %37 = tpu.dynamic_rotate %32 by %c240_i32_18 dim 1 : vector<8x256xf32>, i32 -> vector<8x256xf32>
    %38 = arith.maximumf %32, %37 : vector<8x256xf32>
    %c1 = arith.constant 1 : index
    %c0_19 = arith.constant 0 : index
    %c0_20 = arith.constant 0 : index
    %39 = vector.load %arg1[%c1, %c0_19, %c0_20] : memref<4x1x256xf32, #tpu.memory_space<vmem>>, vector<1x1x256xf32>
    %40 = vector.shape_cast %39 : vector<1x1x256xf32> to vector<1x256xf32>
    %41 = vector.shape_cast %40 : vector<1x256xf32> to vector<1x256xf32>
    %42 = vector.broadcast %41 : vector<1x256xf32> to vector<8x256xf32>
    %43 = arith.subf %34, %38 : vector<8x256xf32>
    %44 = arith.mulf %43, %43 : vector<8x256xf32>
    %45 = vector.shape_cast %44 : vector<8x256xf32> to vector<1x8x256xf32>
    %cst_21 = arith.constant dense<0.000000e+00> : vector<8x256xf32>
    %46 = vector.multi_reduction <add>, %45, %cst_21 [0] : vector<1x8x256xf32> to vector<8x256xf32>
    %47 = arith.mulf %46, %42 : vector<8x256xf32>
    %48 = vector.shape_cast %47 : vector<8x256xf32> to vector<1x8x256xf32>
    %cst_22 = arith.constant dense<0.000000e+00> : vector<1xf32>
    %49 = vector.multi_reduction <add>, %48, %cst_22 [1, 2] : vector<1x8x256xf32> to vector<1xf32>
    %50 = vector.shape_cast %49 : vector<1xf32> to vector<1x1x1xf32>
    %51 = vector.extract %50[0, 0, 0] : f32 from vector<1x1x1xf32>
    %52 = vector.broadcast %51 : f32 to vector<1x1xf32>
    %c0_23 = arith.constant 0 : index
    %c1_24 = arith.constant 1 : index
    %c0_25 = arith.constant 0 : index
    %c0_26 = arith.constant 0 : index
    %53 = vector.load %arg5[%c0_23, %c1_24, %c0_25, %c0_26] : memref<1x8x1x1xf32, #tpu.memory_space<vmem>>, vector<1x1x1x1xf32>
    %54 = vector.shape_cast %53 : vector<1x1x1x1xf32> to vector<1x1xf32>
    %55 = vector.shape_cast %52 : vector<1x1xf32> to vector<1x1x1x1xf32>
    tpu.vector_store %arg5[%c0_23, %c1_24, %c0_25, %c0_26], %55 {strides = array<i32>} : memref<1x8x1x1xf32, #tpu.memory_space<vmem>>, vector<1x1x1x1xf32>,
    %56 = arith.subf %36, %38 : vector<8x256xf32>
    %57 = arith.mulf %56, %56 : vector<8x256xf32>
    %58 = vector.shape_cast %57 : vector<8x256xf32> to vector<1x8x256xf32>
    %cst_27 = arith.constant dense<0.000000e+00> : vector<8x256xf32>
    %59 = vector.multi_reduction <add>, %58, %cst_27 [0] : vector<1x8x256xf32> to vector<8x256xf32>
    %60 = arith.mulf %59, %42 : vector<8x256xf32>
    %61 = vector.shape_cast %60 : vector<8x256xf32> to vector<1x8x256xf32>
    %cst_28 = arith.constant dense<0.000000e+00> : vector<1xf32>
    %62 = vector.multi_reduction <add>, %61, %cst_28 [1, 2] : vector<1x8x256xf32> to vector<1xf32>
    %63 = vector.shape_cast %62 : vector<1xf32> to vector<1x1x1xf32>
    %64 = vector.extract %63[0, 0, 0] : f32 from vector<1x1x1xf32>
    %65 = vector.broadcast %64 : f32 to vector<1x1xf32>
    %c0_29 = arith.constant 0 : index
    %c5 = arith.constant 5 : index
    %c0_30 = arith.constant 0 : index
    %c0_31 = arith.constant 0 : index
    %66 = vector.load %arg5[%c0_29, %c5, %c0_30, %c0_31] : memref<1x8x1x1xf32, #tpu.memory_space<vmem>>, vector<1x1x1x1xf32>
    %67 = vector.shape_cast %66 : vector<1x1x1x1xf32> to vector<1x1xf32>
    %68 = vector.shape_cast %65 : vector<1x1xf32> to vector<1x1x1x1xf32>
    tpu.vector_store %arg5[%c0_29, %c5, %c0_30, %c0_31], %68 {strides = array<i32>} : memref<1x8x1x1xf32, #tpu.memory_space<vmem>>, vector<1x1x1x1xf32>,
    %c254_i32 = arith.constant 254 : i32
    %69 = tpu.dynamic_rotate %34 by %c254_i32 dim 1 : vector<8x256xf32>, i32 -> vector<8x256xf32>
    %70 = arith.maximumf %34, %69 : vector<8x256xf32>
    %c254_i32_32 = arith.constant 254 : i32
    %71 = tpu.dynamic_rotate %36 by %c254_i32_32 dim 1 : vector<8x256xf32>, i32 -> vector<8x256xf32>
    %72 = arith.maximumf %36, %71 : vector<8x256xf32>
    %c254_i32_33 = arith.constant 254 : i32
    %73 = tpu.dynamic_rotate %38 by %c254_i32_33 dim 1 : vector<8x256xf32>, i32 -> vector<8x256xf32>
    %74 = arith.maximumf %38, %73 : vector<8x256xf32>
    %c224_i32 = arith.constant 224 : i32
    %75 = tpu.dynamic_rotate %70 by %c224_i32 dim 1 : vector<8x256xf32>, i32 -> vector<8x256xf32>
    %76 = arith.maximumf %70, %75 : vector<8x256xf32>
    %c224_i32_34 = arith.constant 224 : i32
    %77 = tpu.dynamic_rotate %72 by %c224_i32_34 dim 1 : vector<8x256xf32>, i32 -> vector<8x256xf32>
    %78 = arith.maximumf %72, %77 : vector<8x256xf32>
    %c224_i32_35 = arith.constant 224 : i32
    %79 = tpu.dynamic_rotate %74 by %c224_i32_35 dim 1 : vector<8x256xf32>, i32 -> vector<8x256xf32>
    %80 = arith.maximumf %74, %79 : vector<8x256xf32>
    %c2 = arith.constant 2 : index
    %c0_36 = arith.constant 0 : index
    %c0_37 = arith.constant 0 : index
    %81 = vector.load %arg1[%c2, %c0_36, %c0_37] : memref<4x1x256xf32, #tpu.memory_space<vmem>>, vector<1x1x256xf32>
    %82 = vector.shape_cast %81 : vector<1x1x256xf32> to vector<1x256xf32>
    %83 = vector.shape_cast %82 : vector<1x256xf32> to vector<1x256xf32>
    %84 = vector.broadcast %83 : vector<1x256xf32> to vector<8x256xf32>
    %85 = arith.subf %76, %80 : vector<8x256xf32>
    %86 = arith.mulf %85, %85 : vector<8x256xf32>
    %87 = vector.shape_cast %86 : vector<8x256xf32> to vector<1x8x256xf32>
    %cst_38 = arith.constant dense<0.000000e+00> : vector<8x256xf32>
    %88 = vector.multi_reduction <add>, %87, %cst_38 [0] : vector<1x8x256xf32> to vector<8x256xf32>
    %89 = arith.mulf %88, %84 : vector<8x256xf32>
    %90 = vector.shape_cast %89 : vector<8x256xf32> to vector<1x8x256xf32>
    %cst_39 = arith.constant dense<0.000000e+00> : vector<1xf32>
    %91 = vector.multi_reduction <add>, %90, %cst_39 [1, 2] : vector<1x8x256xf32> to vector<1xf32>
    %92 = vector.shape_cast %91 : vector<1xf32> to vector<1x1x1xf32>
    %93 = vector.extract %92[0, 0, 0] : f32 from vector<1x1x1xf32>
    %94 = vector.broadcast %93 : f32 to vector<1x1xf32>
    %c0_40 = arith.constant 0 : index
    %c2_41 = arith.constant 2 : index
    %c0_42 = arith.constant 0 : index
    %c0_43 = arith.constant 0 : index
    %95 = vector.load %arg5[%c0_40, %c2_41, %c0_42, %c0_43] : memref<1x8x1x1xf32, #tpu.memory_space<vmem>>, vector<1x1x1x1xf32>
    %96 = vector.shape_cast %95 : vector<1x1x1x1xf32> to vector<1x1xf32>
    %97 = vector.shape_cast %94 : vector<1x1xf32> to vector<1x1x1x1xf32>
    tpu.vector_store %arg5[%c0_40, %c2_41, %c0_42, %c0_43], %97 {strides = array<i32>} : memref<1x8x1x1xf32, #tpu.memory_space<vmem>>, vector<1x1x1x1xf32>,
    %98 = arith.subf %78, %80 : vector<8x256xf32>
    %99 = arith.mulf %98, %98 : vector<8x256xf32>
    %100 = vector.shape_cast %99 : vector<8x256xf32> to vector<1x8x256xf32>
    %cst_44 = arith.constant dense<0.000000e+00> : vector<8x256xf32>
    %101 = vector.multi_reduction <add>, %100, %cst_44 [0] : vector<1x8x256xf32> to vector<8x256xf32>
    %102 = arith.mulf %101, %84 : vector<8x256xf32>
    %103 = vector.shape_cast %102 : vector<8x256xf32> to vector<1x8x256xf32>
    %cst_45 = arith.constant dense<0.000000e+00> : vector<1xf32>
    %104 = vector.multi_reduction <add>, %103, %cst_45 [1, 2] : vector<1x8x256xf32> to vector<1xf32>
    %105 = vector.shape_cast %104 : vector<1xf32> to vector<1x1x1xf32>
    %106 = vector.extract %105[0, 0, 0] : f32 from vector<1x1x1xf32>
    %107 = vector.broadcast %106 : f32 to vector<1x1xf32>
    %c0_46 = arith.constant 0 : index
    %c6 = arith.constant 6 : index
    %c0_47 = arith.constant 0 : index
    %c0_48 = arith.constant 0 : index
    %108 = vector.load %arg5[%c0_46, %c6, %c0_47, %c0_48] : memref<1x8x1x1xf32, #tpu.memory_space<vmem>>, vector<1x1x1x1xf32>
    %109 = vector.shape_cast %108 : vector<1x1x1x1xf32> to vector<1x1xf32>
    %110 = vector.shape_cast %107 : vector<1x1xf32> to vector<1x1x1x1xf32>
    tpu.vector_store %arg5[%c0_46, %c6, %c0_47, %c0_48], %110 {strides = array<i32>} : memref<1x8x1x1xf32, #tpu.memory_space<vmem>>, vector<1x1x1x1xf32>,
    %c252_i32 = arith.constant 252 : i32
    %111 = tpu.dynamic_rotate %76 by %c252_i32 dim 1 : vector<8x256xf32>, i32 -> vector<8x256xf32>
    %112 = arith.maximumf %76, %111 : vector<8x256xf32>
    %c252_i32_49 = arith.constant 252 : i32
    %113 = tpu.dynamic_rotate %78 by %c252_i32_49 dim 1 : vector<8x256xf32>, i32 -> vector<8x256xf32>
    %114 = arith.maximumf %78, %113 : vector<8x256xf32>
    %c252_i32_50 = arith.constant 252 : i32
    %115 = tpu.dynamic_rotate %80 by %c252_i32_50 dim 1 : vector<8x256xf32>, i32 -> vector<8x256xf32>
    %116 = arith.maximumf %80, %115 : vector<8x256xf32>
    %c192_i32 = arith.constant 192 : i32
    %117 = tpu.dynamic_rotate %112 by %c192_i32 dim 1 : vector<8x256xf32>, i32 -> vector<8x256xf32>
    %118 = arith.maximumf %112, %117 : vector<8x256xf32>
    %c192_i32_51 = arith.constant 192 : i32
    %119 = tpu.dynamic_rotate %114 by %c192_i32_51 dim 1 : vector<8x256xf32>, i32 -> vector<8x256xf32>
    %120 = arith.maximumf %114, %119 : vector<8x256xf32>
    %c192_i32_52 = arith.constant 192 : i32
    %121 = tpu.dynamic_rotate %116 by %c192_i32_52 dim 1 : vector<8x256xf32>, i32 -> vector<8x256xf32>
    %122 = arith.maximumf %116, %121 : vector<8x256xf32>
    %c3 = arith.constant 3 : index
    %c0_53 = arith.constant 0 : index
    %c0_54 = arith.constant 0 : index
    %123 = vector.load %arg1[%c3, %c0_53, %c0_54] : memref<4x1x256xf32, #tpu.memory_space<vmem>>, vector<1x1x256xf32>
    %124 = vector.shape_cast %123 : vector<1x1x256xf32> to vector<1x256xf32>
    %125 = vector.shape_cast %124 : vector<1x256xf32> to vector<1x256xf32>
    %126 = vector.broadcast %125 : vector<1x256xf32> to vector<8x256xf32>
    %127 = arith.subf %118, %122 : vector<8x256xf32>
    %128 = arith.mulf %127, %127 : vector<8x256xf32>
    %129 = vector.shape_cast %128 : vector<8x256xf32> to vector<1x8x256xf32>
    %cst_55 = arith.constant dense<0.000000e+00> : vector<8x256xf32>
    %130 = vector.multi_reduction <add>, %129, %cst_55 [0] : vector<1x8x256xf32> to vector<8x256xf32>
    %131 = arith.mulf %130, %126 : vector<8x256xf32>
    %132 = vector.shape_cast %131 : vector<8x256xf32> to vector<1x8x256xf32>
    %cst_56 = arith.constant dense<0.000000e+00> : vector<1xf32>
    %133 = vector.multi_reduction <add>, %132, %cst_56 [1, 2] : vector<1x8x256xf32> to vector<1xf32>
    %134 = vector.shape_cast %133 : vector<1xf32> to vector<1x1x1xf32>
    %135 = vector.extract %134[0, 0, 0] : f32 from vector<1x1x1xf32>
    %136 = vector.broadcast %135 : f32 to vector<1x1xf32>
    %c0_57 = arith.constant 0 : index
    %c3_58 = arith.constant 3 : index
    %c0_59 = arith.constant 0 : index
    %c0_60 = arith.constant 0 : index
    %137 = vector.load %arg5[%c0_57, %c3_58, %c0_59, %c0_60] : memref<1x8x1x1xf32, #tpu.memory_space<vmem>>, vector<1x1x1x1xf32>
    %138 = vector.shape_cast %137 : vector<1x1x1x1xf32> to vector<1x1xf32>
    %139 = vector.shape_cast %136 : vector<1x1xf32> to vector<1x1x1x1xf32>
    tpu.vector_store %arg5[%c0_57, %c3_58, %c0_59, %c0_60], %139 {strides = array<i32>} : memref<1x8x1x1xf32, #tpu.memory_space<vmem>>, vector<1x1x1x1xf32>,
    %140 = arith.subf %120, %122 : vector<8x256xf32>
    %141 = arith.mulf %140, %140 : vector<8x256xf32>
    %142 = vector.shape_cast %141 : vector<8x256xf32> to vector<1x8x256xf32>
    %cst_61 = arith.constant dense<0.000000e+00> : vector<8x256xf32>
    %143 = vector.multi_reduction <add>, %142, %cst_61 [0] : vector<1x8x256xf32> to vector<8x256xf32>
    %144 = arith.mulf %143, %126 : vector<8x256xf32>
    %145 = vector.shape_cast %144 : vector<8x256xf32> to vector<1x8x256xf32>
    %cst_62 = arith.constant dense<0.000000e+00> : vector<1xf32>
    %146 = vector.multi_reduction <add>, %145, %cst_62 [1, 2] : vector<1x8x256xf32> to vector<1xf32>
    %147 = vector.shape_cast %146 : vector<1xf32> to vector<1x1x1xf32>
    %148 = vector.extract %147[0, 0, 0] : f32 from vector<1x1x1xf32>
    %149 = vector.broadcast %148 : f32 to vector<1x1xf32>
    %c0_63 = arith.constant 0 : index
    %c7 = arith.constant 7 : index
    %c0_64 = arith.constant 0 : index
    %c0_65 = arith.constant 0 : index
    %150 = vector.load %arg5[%c0_63, %c7, %c0_64, %c0_65] : memref<1x8x1x1xf32, #tpu.memory_space<vmem>>, vector<1x1x1x1xf32>
    %151 = vector.shape_cast %150 : vector<1x1x1x1xf32> to vector<1x1xf32>
    %152 = vector.shape_cast %149 : vector<1x1xf32> to vector<1x1x1x1xf32>
    tpu.vector_store %arg5[%c0_63, %c7, %c0_64, %c0_65], %152 {strides = array<i32>} : memref<1x8x1x1xf32, #tpu.memory_space<vmem>>, vector<1x1x1x1xf32>,
    return
  }
  func.func @transform_0(%arg0: i32) -> (i32, i32, i32) {
    %c0_i32 = arith.constant 0 : i32
    %c0_i32_0 = arith.constant 0 : i32
    %c0_i32_1 = arith.constant 0 : i32
    %c0_i32_2 = arith.constant 0 : i32
    return %c0_i32, %c0_i32_0, %c0_i32_1 : i32, i32, i32
  }
  func.func @transform_1(%arg0: i32) -> (i32, i32) {
    %c0_i32 = arith.constant 0 : i32
    %c0_i32_0 = arith.constant 0 : i32
    return %arg0, %c0_i32 : i32, i32
  }
  func.func @transform_2(%arg0: i32) -> (i32, i32) {
    %c0_i32 = arith.constant 0 : i32
    %c0_i32_0 = arith.constant 0 : i32
    return %arg0, %c0_i32 : i32, i32
  }
  func.func @transform_3(%arg0: i32) -> (i32, i32) {
    %c0_i32 = arith.constant 0 : i32
    %c0_i32_0 = arith.constant 0 : i32
    return %arg0, %c0_i32 : i32, i32
  }
  func.func @transform_4(%arg0: i32) -> (i32, i32, i32, i32) {
    %c0_i32 = arith.constant 0 : i32
    %c0_i32_0 = arith.constant 0 : i32
    %c0_i32_1 = arith.constant 0 : i32
    %c0_i32_2 = arith.constant 0 : i32
    return %arg0, %c0_i32, %c0_i32_0, %c0_i32_1 : i32, i32, i32, i32
  }
}

module attributes {stable_mosaic.version = 11 : i64} {
  func.func @_pyramid_sse_kernel(%arg0: i32, %arg1: memref<4x1x256xf32, #tpu.memory_space<vmem>>, %arg2: memref<8x256xf32, #tpu.memory_space<vmem>>, %arg3: memref<8x256xf32, #tpu.memory_space<vmem>>, %arg4: memref<1x4x1x1xf32, #tpu.memory_space<vmem>>) attributes {dimension_semantics = [#tpu.dimension_semantics<parallel>], iteration_bounds = array<i64: 1>, scalar_prefetch = 0 : i64, scratch_operands = 0 : i64, tpu.core_type = #tpu.core_type<tc>, window_params = [{pipeline_mode = #tpu.pipeline_mode<synchronous>, transform_indices = @transform_0, window_bounds = array<i64: 4, 1, 256>}, {transform_indices = @transform_1, window_bounds = array<i64: 8, 256>}, {transform_indices = @transform_2, window_bounds = array<i64: 8, 256>}, {transform_indices = @transform_3, window_bounds = array<i64: 1, 4, 1, 1>}]} {
    %c0 = arith.constant 0 : index
    %c0_0 = arith.constant 0 : index
    %0 = vector.load %arg3[%c0, %c0_0] : memref<8x256xf32, #tpu.memory_space<vmem>>, vector<8x256xf32>
    %c0_1 = arith.constant 0 : index
    %c0_2 = arith.constant 0 : index
    %1 = vector.load %arg2[%c0_1, %c0_2] : memref<8x256xf32, #tpu.memory_space<vmem>>, vector<8x256xf32>
    %2 = arith.subf %1, %0 : vector<8x256xf32>
    %3 = arith.mulf %2, %2 : vector<8x256xf32>
    %4 = vector.shape_cast %3 : vector<8x256xf32> to vector<1x8x256xf32>
    %cst = arith.constant dense<0.000000e+00> : vector<8x256xf32>
    %5 = vector.multi_reduction <add>, %4, %cst [0] : vector<1x8x256xf32> to vector<8x256xf32>
    %6 = vector.shape_cast %5 : vector<8x256xf32> to vector<1x8x256xf32>
    %cst_3 = arith.constant dense<0.000000e+00> : vector<1xf32>
    %7 = vector.multi_reduction <add>, %6, %cst_3 [1, 2] : vector<1x8x256xf32> to vector<1xf32>
    %8 = vector.shape_cast %7 : vector<1xf32> to vector<1x1x1xf32>
    %9 = vector.extract %8[0, 0, 0] : f32 from vector<1x1x1xf32>
    %10 = vector.broadcast %9 : f32 to vector<1x1xf32>
    %c0_4 = arith.constant 0 : index
    %c0_5 = arith.constant 0 : index
    %c0_6 = arith.constant 0 : index
    %c0_7 = arith.constant 0 : index
    %11 = vector.load %arg4[%c0_4, %c0_5, %c0_6, %c0_7] : memref<1x4x1x1xf32, #tpu.memory_space<vmem>>, vector<1x1x1x1xf32>
    %12 = vector.shape_cast %11 : vector<1x1x1x1xf32> to vector<1x1xf32>
    %13 = vector.shape_cast %10 : vector<1x1xf32> to vector<1x1x1x1xf32>
    tpu.vector_store %arg4[%c0_4, %c0_5, %c0_6, %c0_7], %13 {strides = array<i32>} : memref<1x4x1x1xf32, #tpu.memory_space<vmem>>, vector<1x1x1x1xf32>,
    %c255_i32 = arith.constant 255 : i32
    %14 = tpu.dynamic_rotate %1 by %c255_i32 dim 1 : vector<8x256xf32>, i32 -> vector<8x256xf32>
    %15 = arith.maximumf %1, %14 : vector<8x256xf32>
    %c255_i32_8 = arith.constant 255 : i32
    %16 = tpu.dynamic_rotate %0 by %c255_i32_8 dim 1 : vector<8x256xf32>, i32 -> vector<8x256xf32>
    %17 = arith.maximumf %0, %16 : vector<8x256xf32>
    %c240_i32 = arith.constant 240 : i32
    %18 = tpu.dynamic_rotate %15 by %c240_i32 dim 1 : vector<8x256xf32>, i32 -> vector<8x256xf32>
    %19 = arith.maximumf %15, %18 : vector<8x256xf32>
    %c240_i32_9 = arith.constant 240 : i32
    %20 = tpu.dynamic_rotate %17 by %c240_i32_9 dim 1 : vector<8x256xf32>, i32 -> vector<8x256xf32>
    %21 = arith.maximumf %17, %20 : vector<8x256xf32>
    %c1 = arith.constant 1 : index
    %c0_10 = arith.constant 0 : index
    %c0_11 = arith.constant 0 : index
    %22 = vector.load %arg1[%c1, %c0_10, %c0_11] : memref<4x1x256xf32, #tpu.memory_space<vmem>>, vector<1x1x256xf32>
    %23 = vector.shape_cast %22 : vector<1x1x256xf32> to vector<1x256xf32>
    %24 = vector.shape_cast %23 : vector<1x256xf32> to vector<1x256xf32>
    %25 = vector.broadcast %24 : vector<1x256xf32> to vector<8x256xf32>
    %26 = arith.subf %19, %21 : vector<8x256xf32>
    %27 = arith.mulf %26, %26 : vector<8x256xf32>
    %28 = vector.shape_cast %27 : vector<8x256xf32> to vector<1x8x256xf32>
    %cst_12 = arith.constant dense<0.000000e+00> : vector<8x256xf32>
    %29 = vector.multi_reduction <add>, %28, %cst_12 [0] : vector<1x8x256xf32> to vector<8x256xf32>
    %30 = arith.mulf %29, %25 : vector<8x256xf32>
    %31 = vector.shape_cast %30 : vector<8x256xf32> to vector<1x8x256xf32>
    %cst_13 = arith.constant dense<0.000000e+00> : vector<1xf32>
    %32 = vector.multi_reduction <add>, %31, %cst_13 [1, 2] : vector<1x8x256xf32> to vector<1xf32>
    %33 = vector.shape_cast %32 : vector<1xf32> to vector<1x1x1xf32>
    %34 = vector.extract %33[0, 0, 0] : f32 from vector<1x1x1xf32>
    %35 = vector.broadcast %34 : f32 to vector<1x1xf32>
    %c0_14 = arith.constant 0 : index
    %c1_15 = arith.constant 1 : index
    %c0_16 = arith.constant 0 : index
    %c0_17 = arith.constant 0 : index
    %36 = vector.load %arg4[%c0_14, %c1_15, %c0_16, %c0_17] : memref<1x4x1x1xf32, #tpu.memory_space<vmem>>, vector<1x1x1x1xf32>
    %37 = vector.shape_cast %36 : vector<1x1x1x1xf32> to vector<1x1xf32>
    %38 = vector.shape_cast %35 : vector<1x1xf32> to vector<1x1x1x1xf32>
    tpu.vector_store %arg4[%c0_14, %c1_15, %c0_16, %c0_17], %38 {strides = array<i32>} : memref<1x4x1x1xf32, #tpu.memory_space<vmem>>, vector<1x1x1x1xf32>,
    %c254_i32 = arith.constant 254 : i32
    %39 = tpu.dynamic_rotate %19 by %c254_i32 dim 1 : vector<8x256xf32>, i32 -> vector<8x256xf32>
    %40 = arith.maximumf %19, %39 : vector<8x256xf32>
    %c254_i32_18 = arith.constant 254 : i32
    %41 = tpu.dynamic_rotate %21 by %c254_i32_18 dim 1 : vector<8x256xf32>, i32 -> vector<8x256xf32>
    %42 = arith.maximumf %21, %41 : vector<8x256xf32>
    %c224_i32 = arith.constant 224 : i32
    %43 = tpu.dynamic_rotate %40 by %c224_i32 dim 1 : vector<8x256xf32>, i32 -> vector<8x256xf32>
    %44 = arith.maximumf %40, %43 : vector<8x256xf32>
    %c224_i32_19 = arith.constant 224 : i32
    %45 = tpu.dynamic_rotate %42 by %c224_i32_19 dim 1 : vector<8x256xf32>, i32 -> vector<8x256xf32>
    %46 = arith.maximumf %42, %45 : vector<8x256xf32>
    %c2 = arith.constant 2 : index
    %c0_20 = arith.constant 0 : index
    %c0_21 = arith.constant 0 : index
    %47 = vector.load %arg1[%c2, %c0_20, %c0_21] : memref<4x1x256xf32, #tpu.memory_space<vmem>>, vector<1x1x256xf32>
    %48 = vector.shape_cast %47 : vector<1x1x256xf32> to vector<1x256xf32>
    %49 = vector.shape_cast %48 : vector<1x256xf32> to vector<1x256xf32>
    %50 = vector.broadcast %49 : vector<1x256xf32> to vector<8x256xf32>
    %51 = arith.subf %44, %46 : vector<8x256xf32>
    %52 = arith.mulf %51, %51 : vector<8x256xf32>
    %53 = vector.shape_cast %52 : vector<8x256xf32> to vector<1x8x256xf32>
    %cst_22 = arith.constant dense<0.000000e+00> : vector<8x256xf32>
    %54 = vector.multi_reduction <add>, %53, %cst_22 [0] : vector<1x8x256xf32> to vector<8x256xf32>
    %55 = arith.mulf %54, %50 : vector<8x256xf32>
    %56 = vector.shape_cast %55 : vector<8x256xf32> to vector<1x8x256xf32>
    %cst_23 = arith.constant dense<0.000000e+00> : vector<1xf32>
    %57 = vector.multi_reduction <add>, %56, %cst_23 [1, 2] : vector<1x8x256xf32> to vector<1xf32>
    %58 = vector.shape_cast %57 : vector<1xf32> to vector<1x1x1xf32>
    %59 = vector.extract %58[0, 0, 0] : f32 from vector<1x1x1xf32>
    %60 = vector.broadcast %59 : f32 to vector<1x1xf32>
    %c0_24 = arith.constant 0 : index
    %c2_25 = arith.constant 2 : index
    %c0_26 = arith.constant 0 : index
    %c0_27 = arith.constant 0 : index
    %61 = vector.load %arg4[%c0_24, %c2_25, %c0_26, %c0_27] : memref<1x4x1x1xf32, #tpu.memory_space<vmem>>, vector<1x1x1x1xf32>
    %62 = vector.shape_cast %61 : vector<1x1x1x1xf32> to vector<1x1xf32>
    %63 = vector.shape_cast %60 : vector<1x1xf32> to vector<1x1x1x1xf32>
    tpu.vector_store %arg4[%c0_24, %c2_25, %c0_26, %c0_27], %63 {strides = array<i32>} : memref<1x4x1x1xf32, #tpu.memory_space<vmem>>, vector<1x1x1x1xf32>,
    %c252_i32 = arith.constant 252 : i32
    %64 = tpu.dynamic_rotate %44 by %c252_i32 dim 1 : vector<8x256xf32>, i32 -> vector<8x256xf32>
    %65 = arith.maximumf %44, %64 : vector<8x256xf32>
    %c252_i32_28 = arith.constant 252 : i32
    %66 = tpu.dynamic_rotate %46 by %c252_i32_28 dim 1 : vector<8x256xf32>, i32 -> vector<8x256xf32>
    %67 = arith.maximumf %46, %66 : vector<8x256xf32>
    %c192_i32 = arith.constant 192 : i32
    %68 = tpu.dynamic_rotate %65 by %c192_i32 dim 1 : vector<8x256xf32>, i32 -> vector<8x256xf32>
    %69 = arith.maximumf %65, %68 : vector<8x256xf32>
    %c192_i32_29 = arith.constant 192 : i32
    %70 = tpu.dynamic_rotate %67 by %c192_i32_29 dim 1 : vector<8x256xf32>, i32 -> vector<8x256xf32>
    %71 = arith.maximumf %67, %70 : vector<8x256xf32>
    %c3 = arith.constant 3 : index
    %c0_30 = arith.constant 0 : index
    %c0_31 = arith.constant 0 : index
    %72 = vector.load %arg1[%c3, %c0_30, %c0_31] : memref<4x1x256xf32, #tpu.memory_space<vmem>>, vector<1x1x256xf32>
    %73 = vector.shape_cast %72 : vector<1x1x256xf32> to vector<1x256xf32>
    %74 = vector.shape_cast %73 : vector<1x256xf32> to vector<1x256xf32>
    %75 = vector.broadcast %74 : vector<1x256xf32> to vector<8x256xf32>
    %76 = arith.subf %69, %71 : vector<8x256xf32>
    %77 = arith.mulf %76, %76 : vector<8x256xf32>
    %78 = vector.shape_cast %77 : vector<8x256xf32> to vector<1x8x256xf32>
    %cst_32 = arith.constant dense<0.000000e+00> : vector<8x256xf32>
    %79 = vector.multi_reduction <add>, %78, %cst_32 [0] : vector<1x8x256xf32> to vector<8x256xf32>
    %80 = arith.mulf %79, %75 : vector<8x256xf32>
    %81 = vector.shape_cast %80 : vector<8x256xf32> to vector<1x8x256xf32>
    %cst_33 = arith.constant dense<0.000000e+00> : vector<1xf32>
    %82 = vector.multi_reduction <add>, %81, %cst_33 [1, 2] : vector<1x8x256xf32> to vector<1xf32>
    %83 = vector.shape_cast %82 : vector<1xf32> to vector<1x1x1xf32>
    %84 = vector.extract %83[0, 0, 0] : f32 from vector<1x1x1xf32>
    %85 = vector.broadcast %84 : f32 to vector<1x1xf32>
    %c0_34 = arith.constant 0 : index
    %c3_35 = arith.constant 3 : index
    %c0_36 = arith.constant 0 : index
    %c0_37 = arith.constant 0 : index
    %86 = vector.load %arg4[%c0_34, %c3_35, %c0_36, %c0_37] : memref<1x4x1x1xf32, #tpu.memory_space<vmem>>, vector<1x1x1x1xf32>
    %87 = vector.shape_cast %86 : vector<1x1x1x1xf32> to vector<1x1xf32>
    %88 = vector.shape_cast %85 : vector<1x1xf32> to vector<1x1x1x1xf32>
    tpu.vector_store %arg4[%c0_34, %c3_35, %c0_36, %c0_37], %88 {strides = array<i32>} : memref<1x4x1x1xf32, #tpu.memory_space<vmem>>, vector<1x1x1x1xf32>,
    return
  }
  func.func @transform_0(%arg0: i32) -> (i32, i32, i32) {
    %c0_i32 = arith.constant 0 : i32
    %c0_i32_0 = arith.constant 0 : i32
    %c0_i32_1 = arith.constant 0 : i32
    %c0_i32_2 = arith.constant 0 : i32
    return %c0_i32, %c0_i32_0, %c0_i32_1 : i32, i32, i32
  }
  func.func @transform_1(%arg0: i32) -> (i32, i32) {
    %c0_i32 = arith.constant 0 : i32
    %c0_i32_0 = arith.constant 0 : i32
    return %arg0, %c0_i32 : i32, i32
  }
  func.func @transform_2(%arg0: i32) -> (i32, i32) {
    %c0_i32 = arith.constant 0 : i32
    %c0_i32_0 = arith.constant 0 : i32
    return %arg0, %c0_i32 : i32, i32
  }
  func.func @transform_3(%arg0: i32) -> (i32, i32, i32, i32) {
    %c0_i32 = arith.constant 0 : i32
    %c0_i32_0 = arith.constant 0 : i32
    %c0_i32_1 = arith.constant 0 : i32
    %c0_i32_2 = arith.constant 0 : i32
    return %arg0, %c0_i32, %c0_i32_0, %c0_i32_1 : i32, i32, i32, i32
  }
}

</mosaic_0001>

<llo_original>
// kernel: snow_loss.3
$region0: #{snow_loss.3}
  #allocation0 [shape = 'u32[]', space=smem, size = 0x4, offset = 0x4, fixed_abs, tag = 'smem constant byte address 0x4 - core index']
  #allocation1 [shape = 'u32[144,128]{1,0:T(1,128)}', space=vmem, size = 0x12000, scoped, tag = 'internal scratch']
  %s0 = inlined_call_operand.vmem [shape: f32[4,1,256], index: 0, kind: input, shape index: {}]
  %s1 = inlined_call_operand.vmem [shape: f32[8,256], index: 1, kind: input, shape index: {}]
  %s2 = inlined_call_operand.vmem [shape: f32[8,256], index: 2, kind: input, shape index: {}]
  %s3 = inlined_call_operand.vmem [shape: f32[1,4,1,1], index: 3, kind: output, shape index: {}]
  %s4 = sld [smem:[#allocation0]]
  $region22: #{snow_loss.3} parent=0
    _
  %s6 = ssub.s32 1, %s4
  %s7 = scalar_select 0, %s6, %s4
  // Predicated region
  $region2: #{snow_loss.3} parent=0 // pred_check
    _
  $region3: #{snow_loss.3} parent=0 // pred_check_branch
    %9 = sbr.rel (0) target = $region5
  $region4: #{snow_loss.3} parent=0 // pred_region
    _
  $region5: #{snow_loss.3} parent=0 // pred_fallthru
    _
  // Predicated region
  $region6: #{snow_loss.3} parent=0 // pred_check
    _
  $region7: #{snow_loss.3} parent=0 // pred_check_branch
    %11 = sbr.rel (0) target = $region9
  $region8: #{snow_loss.3} parent=0 // pred_region
    _
  $region9: #{snow_loss.3} parent=0 // pred_fallthru
    _
  // Predicated region
  $region10: #{snow_loss.3} parent=0 // pred_check
    _
  $region11: #{snow_loss.3} parent=0 // pred_check_branch
    %13 = sbr.rel (0) target = $region13
  $region12: #{snow_loss.3} parent=0 // pred_region
    _
  $region13: #{snow_loss.3} parent=0 // pred_fallthru
    _
  %v14 = vld [vmem:[%s2] sm:$0xff]
  %v15 = vld [vmem:[%s2 + $0x8] sm:$0xff]
  %v16 = vld [vmem:[%s1] sm:$0xff]
  %v17 = vld [vmem:[%s1 + $0x8] sm:$0xff]
  %v18 = vsub.f32 %v16, %v14
  %v19 = vsub.f32 %v17, %v15
  %v20 = vmul.f32 %v18, %v18
  %v21 = vmul.f32 %v19, %v19
  %v22 = vadd.f32 %v20, 0.0
  %v23 = vadd.f32 %v21, 0.0
  %v24 = vadd.f32 %v22, %v23
  %25 = vadd.xlane.f32.xlu0 %v24
  %v26 = vpop.xlane.xlu0 %25
  %v27 = vrot.slane %v26, 4
  %v28 = vadd.f32 %v26, %v27
  %v29 = vrot.slane %v28, 2
  %v30 = vadd.f32 %v28, %v29
  %v31 = vrot.slane %v30, 1
  %v32 = vadd.f32 %v30, %v31
  %s33 = vtos %v32
  %v34 = vstv %s33
  %vm35 = vcmask 0
  %36 = vst.msk [vmem:[%s3] sm:$0x1] %vm35, %v34
  %37 = vrot.lane.b32.xlu0 %v16, 127
  %v38 = vpop.permute.xlu0 %37
  %39 = vrot.lane.b32.xlu0 %v17, 127
  %v40 = vpop.permute.xlu0 %39
  %v41 = vlaneseq
  %v42 = vand.u32 %v41, 127
  %vm43 = vcmp.lt.s32.totalorder %v42, 127
  %v44 = vsel %vm43, %v38, %v40
  %v45 = vsel %vm43, %v40, %v38
  %v46 = vmax.f32 %v16, %v44
  %v47 = vmax.f32 %v17, %v45
  %48 = vrot.lane.b32.xlu0 %v14, 127
  %v49 = vpop.permute.xlu0 %48
  %50 = vrot.lane.b32.xlu0 %v15, 127
  %v51 = vpop.permute.xlu0 %50
  %v52 = vsel %vm43, %v49, %v51
  %v53 = vsel %vm43, %v51, %v49
  %v54 = vmax.f32 %v14, %v52
  %v55 = vmax.f32 %v15, %v53
  %56 = vrot.lane.b32.xlu0 %v46, 112
  %v57 = vpop.permute.xlu0 %56
  %58 = vrot.lane.b32.xlu0 %v47, 112
  %v59 = vpop.permute.xlu0 %58
  %vm60 = vcmp.lt.s32.totalorder %v42, 112
  %v61 = vsel %vm60, %v57, %v59
  %v62 = vsel %vm60, %v59, %v57
  %v63 = vmax.f32 %v46, %v61
  %v64 = vmax.f32 %v47, %v62
  %65 = vrot.lane.b32.xlu0 %v54, 112
  %v66 = vpop.permute.xlu0 %65
  %67 = vrot.lane.b32.xlu0 %v55, 112
  %v68 = vpop.permute.xlu0 %67
  %v69 = vsel %vm60, %v66, %v68
  %v70 = vsel %vm60, %v68, %v66
  %v71 = vmax.f32 %v54, %v69
  %v72 = vmax.f32 %v55, %v70
  %s73 = scalar_lea.vmem %s0, 2
  %v74 = vld [vmem:[%s73] sm:$0x3]
  %v76 = vlaneseq
  %v77 = vshrl.u32 %v76, 7
  %v78 = vsub.s32 0, %v77
  %v79 = vrot.slane %v74, %v78
  %v80 = vlaneseq
  %v81 = vshrl.u32 %v80, 7
  %v82 = vsub.s32 1, %v81
  %v83 = vrot.slane %v74, %v82
  %v86 = vsub.f32 %v63, %v71
  %v87 = vsub.f32 %v64, %v72
  %v88 = vmul.f32 %v86, %v86
  %v89 = vmul.f32 %v87, %v87
  %v90 = vadd.f32 %v88, 0.0
  %v91 = vadd.f32 %v89, 0.0
  %v92 = vmul.f32 %v90, %v79
  %v93 = vmul.f32 %v91, %v83
  %v94 = vadd.f32 %v92, %v93
  %95 = vadd.xlane.f32.xlu0 %v94
  %v96 = vpop.xlane.xlu0 %95
  %v97 = vrot.slane %v96, 4
  %v98 = vadd.f32 %v96, %v97
  %v99 = vrot.slane %v98, 2
  %v100 = vadd.f32 %v98, %v99
  %v101 = vrot.slane %v100, 1
  %v102 = vadd.f32 %v100, %v101
  %s103 = vtos %v102
  %v104 = vstv %s103
  %s105 = scalar_lea.vmem %s3, 1
  %106 = vst.msk [vmem:[%s105] sm:$0x1] %vm35, %v104
  %107 = vrot.lane.b32.xlu0 %v63, 126
  %v108 = vpop.permute.xlu0 %107
  %109 = vrot.lane.b32.xlu0 %v64, 126
  %v110 = vpop.permute.xlu0 %109
  %vm111 = vcmp.lt.s32.totalorder %v42, 126
  %v112 = vsel %vm111, %v108, %v110
  %v113 = vsel %vm111, %v110, %v108
  %v114 = vmax.f32 %v63, %v112
  %v115 = vmax.f32 %v64, %v113
  %116 = vrot.lane.b32.xlu0 %v71, 126
  %v117 = vpop.permute.xlu0 %116
  %118 = vrot.lane.b32.xlu0 %v72, 126
  %v119 = vpop.permute.xlu0 %118
  %v120 = vsel %vm111, %v117, %v119
  %v121 = vsel %vm111, %v119, %v117
  %v122 = vmax.f32 %v71, %v120
  %v123 = vmax.f32 %v72, %v121
  %124 = vrot.lane.b32.xlu0 %v114, 96
  %v125 = vpop.permute.xlu0 %124
  %126 = vrot.lane.b32.xlu0 %v115, 96
  %v127 = vpop.permute.xlu0 %126
  %vm128 = vcmp.lt.s32.totalorder %v42, 96
  %v129 = vsel %vm128, %v125, %v127
  %v130 = vsel %vm128, %v127, %v125
  %v131 = vmax.f32 %v114, %v129
  %v132 = vmax.f32 %v115, %v130
  %133 = vrot.lane.b32.xlu0 %v122, 96
  %v134 = vpop.permute.xlu0 %133
  %135 = vrot.lane.b32.xlu0 %v123, 96
  %v136 = vpop.permute.xlu0 %135
  %v137 = vsel %vm128, %v134, %v136
  %v138 = vsel %vm128, %v136, %v134
  %v139 = vmax.f32 %v122, %v137
  %v140 = vmax.f32 %v123, %v138
  %s141 = scalar_lea.vmem %s0, 4
  %v142 = vld [vmem:[%s141] sm:$0x3]
  %v144 = vlaneseq
  %v145 = vshrl.u32 %v144, 7
  %v146 = vsub.s32 0, %v145
  %v147 = vrot.slane %v142, %v146
  %v148 = vlaneseq
  %v149 = vshrl.u32 %v148, 7
  %v150 = vsub.s32 1, %v149
  %v151 = vrot.slane %v142, %v150
  %v154 = vsub.f32 %v131, %v139
  %v155 = vsub.f32 %v132, %v140
  %v156 = vmul.f32 %v154, %v154
  %v157 = vmul.f32 %v155, %v155
  %v158 = vadd.f32 %v156, 0.0
  %v159 = vadd.f32 %v157, 0.0
  %v160 = vmul.f32 %v158, %v147
  %v161 = vmul.f32 %v159, %v151
  %v162 = vadd.f32 %v160, %v161
  %163 = vadd.xlane.f32.xlu0 %v162
  %v164 = vpop.xlane.xlu0 %163
  %v165 = vrot.slane %v164, 4
  %v166 = vadd.f32 %v164, %v165
  %v167 = vrot.slane %v166, 2
  %v168 = vadd.f32 %v166, %v167
  %v169 = vrot.slane %v168, 1
  %v170 = vadd.f32 %v168, %v169
  %s171 = vtos %v170
  %v172 = vstv %s171
  %s173 = scalar_lea.vmem %s3, 2
  %174 = vst.msk [vmem:[%s173] sm:$0x1] %vm35, %v172
  %175 = vrot.lane.b32.xlu0 %v131, 124
  %v176 = vpop.permute.xlu0 %175
  %177 = vrot.lane.b32.xlu0 %v132, 124
  %v178 = vpop.permute.xlu0 %177
  %vm179 = vcmp.lt.s32.totalorder %v42, 124
  %v180 = vsel %vm179, %v176, %v178
  %v181 = vsel %vm179, %v178, %v176
  %v182 = vmax.f32 %v131, %v180
  %v183 = vmax.f32 %v132, %v181
  %184 = vrot.lane.b32.xlu0 %v139, 124
  %v185 = vpop.permute.xlu0 %184
  %186 = vrot.lane.b32.xlu0 %v140, 124
  %v187 = vpop.permute.xlu0 %186
  %v188 = vsel %vm179, %v185, %v187
  %v189 = vsel %vm179, %v187, %v185
  %v190 = vmax.f32 %v139, %v188
  %v191 = vmax.f32 %v140, %v189
  %192 = vrot.lane.b32.xlu0 %v182, 64
  %v193 = vpop.permute.xlu0 %192
  %194 = vrot.lane.b32.xlu0 %v183, 64
  %v195 = vpop.permute.xlu0 %194
  %vm196 = vcmp.lt.s32.totalorder %v42, 64
  %v197 = vsel %vm196, %v193, %v195
  %v198 = vsel %vm196, %v195, %v193
  %v199 = vmax.f32 %v182, %v197
  %v200 = vmax.f32 %v183, %v198
  %201 = vrot.lane.b32.xlu0 %v190, 64
  %v202 = vpop.permute.xlu0 %201
  %203 = vrot.lane.b32.xlu0 %v191, 64
  %v204 = vpop.permute.xlu0 %203
  %v205 = vsel %vm196, %v202, %v204
  %v206 = vsel %vm196, %v204, %v202
  %v207 = vmax.f32 %v190, %v205
  %v208 = vmax.f32 %v191, %v206
  %s209 = scalar_lea.vmem %s0, 6
  %v210 = vld [vmem:[%s209] sm:$0x3]
  %v212 = vlaneseq
  %v213 = vshrl.u32 %v212, 7
  %v214 = vsub.s32 0, %v213
  %v215 = vrot.slane %v210, %v214
  %v216 = vlaneseq
  %v217 = vshrl.u32 %v216, 7
  %v218 = vsub.s32 1, %v217
  %v219 = vrot.slane %v210, %v218
  %v222 = vsub.f32 %v199, %v207
  %v223 = vsub.f32 %v200, %v208
  %v224 = vmul.f32 %v222, %v222
  %v225 = vmul.f32 %v223, %v223
  %v226 = vadd.f32 %v224, 0.0
  %v227 = vadd.f32 %v225, 0.0
  %v228 = vmul.f32 %v226, %v215
  %v229 = vmul.f32 %v227, %v219
  %v230 = vadd.f32 %v228, %v229
  %231 = vadd.xlane.f32.xlu0 %v230
  %v232 = vpop.xlane.xlu0 %231
  %v233 = vrot.slane %v232, 4
  %v234 = vadd.f32 %v232, %v233
  %v235 = vrot.slane %v234, 2
  %v236 = vadd.f32 %v234, %v235
  %v237 = vrot.slane %v236, 1
  %v238 = vadd.f32 %v236, %v237
  %s239 = vtos %v238
  %v240 = vstv %s239
  %s241 = scalar_lea.vmem %s3, 3
  %242 = vst.msk [vmem:[%s241] sm:$0x1] %vm35, %v240
  // Predicated region
  $region14: #{snow_loss.3} parent=0 // pred_check
    _
  $region15: #{snow_loss.3} parent=0 // pred_check_branch
    %244 = sbr.rel (0) target = $region17
  $region16: #{snow_loss.3} parent=0 // pred_region
    _
  $region17: #{snow_loss.3} parent=0 // pred_fallthru
    _
  // Predicated region
  $region18: #{snow_loss.3} parent=0 // pred_check
    _
  $region19: #{snow_loss.3} parent=0 // pred_check_branch
    %246 = sbr.rel (0) target = $region21
  $region20: #{snow_loss.3} parent=0 // pred_region
    _
  $region21: #{snow_loss.3} parent=0 // pred_fallthru
    _

// kernel: snow_loss.2
$region0: #{snow_loss.2}
  #allocation0 [shape = 'u32[]', space=smem, size = 0x4, offset = 0x4, fixed_abs, tag = 'smem constant byte address 0x4 - core index']
  #allocation1 [shape = 'u32[144,128]{1,0:T(1,128)}', space=vmem, size = 0x12000, scoped, tag = 'internal scratch']
  %s0 = inlined_call_operand.vmem [shape: f32[4,1,256], index: 0, kind: input, shape index: {}]
  %s1 = inlined_call_operand.vmem [shape: f32[8,256], index: 1, kind: input, shape index: {}]
  %s2 = inlined_call_operand.vmem [shape: f32[8,256], index: 2, kind: input, shape index: {}]
  %s3 = inlined_call_operand.vmem [shape: f32[8,256], index: 3, kind: input, shape index: {}]
  %s4 = inlined_call_operand.vmem [shape: f32[1,8,1,1], index: 4, kind: output, shape index: {}]
  %s5 = sld [smem:[#allocation0]]
  $region26: #{snow_loss.2} parent=0
    _
  %s7 = ssub.s32 1, %s5
  %s8 = scalar_select 0, %s7, %s5
  // Predicated region
  $region2: #{snow_loss.2} parent=0 // pred_check
    _
  $region3: #{snow_loss.2} parent=0 // pred_check_branch
    %10 = sbr.rel (0) target = $region5
  $region4: #{snow_loss.2} parent=0 // pred_region
    _
  $region5: #{snow_loss.2} parent=0 // pred_fallthru
    _
  // Predicated region
  $region6: #{snow_loss.2} parent=0 // pred_check
    _
  $region7: #{snow_loss.2} parent=0 // pred_check_branch
    %12 = sbr.rel (0) target = $region9
  $region8: #{snow_loss.2} parent=0 // pred_region
    _
  $region9: #{snow_loss.2} parent=0 // pred_fallthru
    _
  // Predicated region
  $region10: #{snow_loss.2} parent=0 // pred_check
    _
  $region11: #{snow_loss.2} parent=0 // pred_check_branch
    %14 = sbr.rel (0) target = $region13
  $region12: #{snow_loss.2} parent=0 // pred_region
    _
  $region13: #{snow_loss.2} parent=0 // pred_fallthru
    _
  // Predicated region
  $region14: #{snow_loss.2} parent=0 // pred_check
    _
  $region15: #{snow_loss.2} parent=0 // pred_check_branch
    %16 = sbr.rel (0) target = $region17
  $region16: #{snow_loss.2} parent=0 // pred_region
    _
  $region17: #{snow_loss.2} parent=0 // pred_fallthru
    _
  %v17 = vld [vmem:[%s3] sm:$0xff]
  %v18 = vld [vmem:[%s3 + $0x8] sm:$0xff]
  %v19 = vld [vmem:[%s1] sm:$0xff]
  %v20 = vld [vmem:[%s1 + $0x8] sm:$0xff]
  %v21 = vld [vmem:[%s2] sm:$0xff]
  %v22 = vld [vmem:[%s2 + $0x8] sm:$0xff]
  %v23 = vsub.f32 %v19, %v17
  %v24 = vsub.f32 %v20, %v18
  %v25 = vmul.f32 %v23, %v23
  %v26 = vmul.f32 %v24, %v24
  %v27 = vadd.f32 %v25, 0.0
  %v28 = vadd.f32 %v26, 0.0
  %v29 = vadd.f32 %v27, %v28
  %30 = vadd.xlane.f32.xlu0 %v29
  %v31 = vpop.xlane.xlu0 %30
  %v32 = vrot.slane %v31, 4
  %v33 = vadd.f32 %v31, %v32
  %v34 = vrot.slane %v33, 2
  %v35 = vadd.f32 %v33, %v34
  %v36 = vrot.slane %v35, 1
  %v37 = vadd.f32 %v35, %v36
  %s38 = vtos %v37
  %v39 = vstv %s38
  %vm40 = vcmask 0
  %41 = vst.msk [vmem:[%s4] sm:$0x1] %vm40, %v39
  %v42 = vsub.f32 %v21, %v17
  %v43 = vsub.f32 %v22, %v18
  %v44 = vmul.f32 %v42, %v42
  %v45 = vmul.f32 %v43, %v43
  %v46 = vadd.f32 %v44, 0.0
  %v47 = vadd.f32 %v45, 0.0
  %v48 = vadd.f32 %v46, %v47
  %49 = vadd.xlane.f32.xlu0 %v48
  %v50 = vpop.xlane.xlu0 %49
  %v51 = vrot.slane %v50, 4
  %v52 = vadd.f32 %v50, %v51
  %v53 = vrot.slane %v52, 2
  %v54 = vadd.f32 %v52, %v53
  %v55 = vrot.slane %v54, 1
  %v56 = vadd.f32 %v54, %v55
  %s57 = vtos %v56
  %v58 = vstv %s57
  %s59 = scalar_lea.vmem %s4, 4
  %60 = vst.msk [vmem:[%s59] sm:$0x1] %vm40, %v58
  %61 = vrot.lane.b32.xlu0 %v19, 127
  %v62 = vpop.permute.xlu0 %61
  %63 = vrot.lane.b32.xlu0 %v20, 127
  %v64 = vpop.permute.xlu0 %63
  %v65 = vlaneseq
  %v66 = vand.u32 %v65, 127
  %vm67 = vcmp.lt.s32.totalorder %v66, 127
  %v68 = vsel %vm67, %v62, %v64
  %v69 = vsel %vm67, %v64, %v62
  %v70 = vmax.f32 %v19, %v68
  %v71 = vmax.f32 %v20, %v69
  %72 = vrot.lane.b32.xlu0 %v21, 127
  %v73 = vpop.permute.xlu0 %72
  %74 = vrot.lane.b32.xlu0 %v22, 127
  %v75 = vpop.permute.xlu0 %74
  %v76 = vsel %vm67, %v73, %v75
  %v77 = vsel %vm67, %v75, %v73
  %v78 = vmax.f32 %v21, %v76
  %v79 = vmax.f32 %v22, %v77
  %80 = vrot.lane.b32.xlu0 %v17, 127
  %v81 = vpop.permute.xlu0 %80
  %82 = vrot.lane.b32.xlu0 %v18, 127
  %v83 = vpop.permute.xlu0 %82
  %v84 = vsel %vm67, %v81, %v83
  %v85 = vsel %vm67, %v83, %v81
  %v86 = vmax.f32 %v17, %v84
  %v87 = vmax.f32 %v18, %v85
  %88 = vrot.lane.b32.xlu0 %v70, 112
  %v89 = vpop.permute.xlu0 %88
  %90 = vrot.lane.b32.xlu0 %v71, 112
  %v91 = vpop.permute.xlu0 %90
  %vm92 = vcmp.lt.s32.totalorder %v66, 112
  %v93 = vsel %vm92, %v89, %v91
  %v94 = vsel %vm92, %v91, %v89
  %v95 = vmax.f32 %v70, %v93
  %v96 = vmax.f32 %v71, %v94
  %97 = vrot.lane.b32.xlu0 %v78, 112
  %v98 = vpop.permute.xlu0 %97
  %99 = vrot.lane.b32.xlu0 %v79, 112
  %v100 = vpop.permute.xlu0 %99
  %v101 = vsel %vm92, %v98, %v100
  %v102 = vsel %vm92, %v100, %v98
  %v103 = vmax.f32 %v78, %v101
  %v104 = vmax.f32 %v79, %v102
  %105 = vrot.lane.b32.xlu0 %v86, 112
  %v106 = vpop.permute.xlu0 %105
  %107 = vrot.lane.b32.xlu0 %v87, 112
  %v108 = vpop.permute.xlu0 %107
  %v109 = vsel %vm92, %v106, %v108
  %v110 = vsel %vm92, %v108, %v106
  %v111 = vmax.f32 %v86, %v109
  %v112 = vmax.f32 %v87, %v110
  %s113 = scalar_lea.vmem %s0, 2
  %v114 = vld [vmem:[%s113] sm:$0x3]
  %v116 = vlaneseq
  %v117 = vshrl.u32 %v116, 7
  %v118 = vsub.s32 0, %v117
  %v119 = vrot.slane %v114, %v118
  %v120 = vlaneseq
  %v121 = vshrl.u32 %v120, 7
  %v122 = vsub.s32 1, %v121
  %v123 = vrot.slane %v114, %v122
  %v126 = vsub.f32 %v95, %v111
  %v127 = vsub.f32 %v96, %v112
  %v128 = vmul.f32 %v126, %v126
  %v129 = vmul.f32 %v127, %v127
  %v130 = vadd.f32 %v128, 0.0
  %v131 = vadd.f32 %v129, 0.0
  %v132 = vmul.f32 %v130, %v119
  %v133 = vmul.f32 %v131, %v123
  %v134 = vadd.f32 %v132, %v133
  %135 = vadd.xlane.f32.xlu0 %v134
  %v136 = vpop.xlane.xlu0 %135
  %v137 = vrot.slane %v136, 4
  %v138 = vadd.f32 %v136, %v137
  %v139 = vrot.slane %v138, 2
  %v140 = vadd.f32 %v138, %v139
  %v141 = vrot.slane %v140, 1
  %v142 = vadd.f32 %v140, %v141
  %s143 = vtos %v142
  %v144 = vstv %s143
  %s145 = scalar_lea.vmem %s4, 1
  %146 = vst.msk [vmem:[%s145] sm:$0x1] %vm40, %v144
  %v147 = vsub.f32 %v103, %v111
  %v148 = vsub.f32 %v104, %v112
  %v149 = vmul.f32 %v147, %v147
  %v150 = vmul.f32 %v148, %v148
  %v151 = vadd.f32 %v149, 0.0
  %v152 = vadd.f32 %v150, 0.0
  %v153 = vmul.f32 %v151, %v119
  %v154 = vmul.f32 %v152, %v123
  %v155 = vadd.f32 %v153, %v154
  %156 = vadd.xlane.f32.xlu0 %v155
  %v157 = vpop.xlane.xlu0 %156
  %v158 = vrot.slane %v157, 4
  %v159 = vadd.f32 %v157, %v158
  %v160 = vrot.slane %v159, 2
  %v161 = vadd.f32 %v159, %v160
  %v162 = vrot.slane %v161, 1
  %v163 = vadd.f32 %v161, %v162
  %s164 = vtos %v163
  %v165 = vstv %s164
  %s166 = scalar_lea.vmem %s4, 5
  %167 = vst.msk [vmem:[%s166] sm:$0x1] %vm40, %v165
  %168 = vrot.lane.b32.xlu0 %v95, 126
  %v169 = vpop.permute.xlu0 %168
  %170 = vrot.lane.b32.xlu0 %v96, 126
  %v171 = vpop.permute.xlu0 %170
  %vm172 = vcmp.lt.s32.totalorder %v66, 126
  %v173 = vsel %vm172, %v169, %v171
  %v174 = vsel %vm172, %v171, %v169
  %v175 = vmax.f32 %v95, %v173
  %v176 = vmax.f32 %v96, %v174
  %177 = vrot.lane.b32.xlu0 %v103, 126
  %v178 = vpop.permute.xlu0 %177
  %179 = vrot.lane.b32.xlu0 %v104, 126
  %v180 = vpop.permute.xlu0 %179
  %v181 = vsel %vm172, %v178, %v180
  %v182 = vsel %vm172, %v180, %v178
  %v183 = vmax.f32 %v103, %v181
  %v184 = vmax.f32 %v104, %v182
  %185 = vrot.lane.b32.xlu0 %v111, 126
  %v186 = vpop.permute.xlu0 %185
  %187 = vrot.lane.b32.xlu0 %v112, 126
  %v188 = vpop.permute.xlu0 %187
  %v189 = vsel %vm172, %v186, %v188
  %v190 = vsel %vm172, %v188, %v186
  %v191 = vmax.f32 %v111, %v189
  %v192 = vmax.f32 %v112, %v190
  %193 = vrot.lane.b32.xlu0 %v175, 96
  %v194 = vpop.permute.xlu0 %193
  %195 = vrot.lane.b32.xlu0 %v176, 96
  %v196 = vpop.permute.xlu0 %195
  %vm197 = vcmp.lt.s32.totalorder %v66, 96
  %v198 = vsel %vm197, %v194, %v196
  %v199 = vsel %vm197, %v196, %v194
  %v200 = vmax.f32 %v175, %v198
  %v201 = vmax.f32 %v176, %v199
  %202 = vrot.lane.b32.xlu0 %v183, 96
  %v203 = vpop.permute.xlu0 %202
  %204 = vrot.lane.b32.xlu0 %v184, 96
  %v205 = vpop.permute.xlu0 %204
  %v206 = vsel %vm197, %v203, %v205
  %v207 = vsel %vm197, %v205, %v203
  %v208 = vmax.f32 %v183, %v206
  %v209 = vmax.f32 %v184, %v207
  %210 = vrot.lane.b32.xlu0 %v191, 96
  %v211 = vpop.permute.xlu0 %210
  %212 = vrot.lane.b32.xlu0 %v192, 96
  %v213 = vpop.permute.xlu0 %212
  %v214 = vsel %vm197, %v211, %v213
  %v215 = vsel %vm197, %v213, %v211
  %v216 = vmax.f32 %v191, %v214
  %v217 = vmax.f32 %v192, %v215
  %s218 = scalar_lea.vmem %s0, 4
  %v219 = vld [vmem:[%s218] sm:$0x3]
  %v221 = vlaneseq
  %v222 = vshrl.u32 %v221, 7
  %v223 = vsub.s32 0, %v222
  %v224 = vrot.slane %v219, %v223
  %v225 = vlaneseq
  %v226 = vshrl.u32 %v225, 7
  %v227 = vsub.s32 1, %v226
  %v228 = vrot.slane %v219, %v227
  %v231 = vsub.f32 %v200, %v216
  %v232 = vsub.f32 %v201, %v217
  %v233 = vmul.f32 %v231, %v231
  %v234 = vmul.f32 %v232, %v232
  %v235 = vadd.f32 %v233, 0.0
  %v236 = vadd.f32 %v234, 0.0
  %v237 = vmul.f32 %v235, %v224
  %v238 = vmul.f32 %v236, %v228
  %v239 = vadd.f32 %v237, %v238
  %240 = vadd.xlane.f32.xlu0 %v239
  %v241 = vpop.xlane.xlu0 %240
  %v242 = vrot.slane %v241, 4
  %v243 = vadd.f32 %v241, %v242
  %v244 = vrot.slane %v243, 2
  %v245 = vadd.f32 %v243, %v244
  %v246 = vrot.slane %v245, 1
  %v247 = vadd.f32 %v245, %v246
  %s248 = vtos %v247
  %v249 = vstv %s248
  %s250 = scalar_lea.vmem %s4, 2
  %251 = vst.msk [vmem:[%s250] sm:$0x1] %vm40, %v249
  %v252 = vsub.f32 %v208, %v216
  %v253 = vsub.f32 %v209, %v217
  %v254 = vmul.f32 %v252, %v252
  %v255 = vmul.f32 %v253, %v253
  %v256 = vadd.f32 %v254, 0.0
  %v257 = vadd.f32 %v255, 0.0
  %v258 = vmul.f32 %v256, %v224
  %v259 = vmul.f32 %v257, %v228
  %v260 = vadd.f32 %v258, %v259
  %261 = vadd.xlane.f32.xlu0 %v260
  %v262 = vpop.xlane.xlu0 %261
  %v263 = vrot.slane %v262, 4
  %v264 = vadd.f32 %v262, %v263
  %v265 = vrot.slane %v264, 2
  %v266 = vadd.f32 %v264, %v265
  %v267 = vrot.slane %v266, 1
  %v268 = vadd.f32 %v266, %v267
  %s269 = vtos %v268
  %v270 = vstv %s269
  %s271 = scalar_lea.vmem %s4, 6
  %272 = vst.msk [vmem:[%s271] sm:$0x1] %vm40, %v270
  %273 = vrot.lane.b32.xlu0 %v200, 124
  %v274 = vpop.permute.xlu0 %273
  %275 = vrot.lane.b32.xlu0 %v201, 124
  %v276 = vpop.permute.xlu0 %275
  %vm277 = vcmp.lt.s32.totalorder %v66, 124
  %v278 = vsel %vm277, %v274, %v276
  %v279 = vsel %vm277, %v276, %v274
  %v280 = vmax.f32 %v200, %v278
  %v281 = vmax.f32 %v201, %v279
  %282 = vrot.lane.b32.xlu0 %v208, 124
  %v283 = vpop.permute.xlu0 %282
  %284 = vrot.lane.b32.xlu0 %v209, 124
  %v285 = vpop.permute.xlu0 %284
  %v286 = vsel %vm277, %v283, %v285
  %v287 = vsel %vm277, %v285, %v283
  %v288 = vmax.f32 %v208, %v286
  %v289 = vmax.f32 %v209, %v287
  %290 = vrot.lane.b32.xlu0 %v216, 124
  %v291 = vpop.permute.xlu0 %290
  %292 = vrot.lane.b32.xlu0 %v217, 124
  %v293 = vpop.permute.xlu0 %292
  %v294 = vsel %vm277, %v291, %v293
  %v295 = vsel %vm277, %v293, %v291
  %v296 = vmax.f32 %v216, %v294
  %v297 = vmax.f32 %v217, %v295
  %298 = vrot.lane.b32.xlu0 %v280, 64
  %v299 = vpop.permute.xlu0 %298
  %300 = vrot.lane.b32.xlu0 %v281, 64
  %v301 = vpop.permute.xlu0 %300
  %vm302 = vcmp.lt.s32.totalorder %v66, 64
  %v303 = vsel %vm302, %v299, %v301
  %v304 = vsel %vm302, %v301, %v299
  %v305 = vmax.f32 %v280, %v303
  %v306 = vmax.f32 %v281, %v304
  %307 = vrot.lane.b32.xlu0 %v288, 64
  %v308 = vpop.permute.xlu0 %307
  %309 = vrot.lane.b32.xlu0 %v289, 64
  %v310 = vpop.permute.xlu0 %309
  %v311 = vsel %vm302, %v308, %v310
  %v312 = vsel %vm302, %v310, %v308
  %v313 = vmax.f32 %v288, %v311
  %v314 = vmax.f32 %v289, %v312
  %315 = vrot.lane.b32.xlu0 %v296, 64
  %v316 = vpop.permute.xlu0 %315
  %317 = vrot.lane.b32.xlu0 %v297, 64
  %v318 = vpop.permute.xlu0 %317
  %v319 = vsel %vm302, %v316, %v318
  %v320 = vsel %vm302, %v318, %v316
  %v321 = vmax.f32 %v296, %v319
  %v322 = vmax.f32 %v297, %v320
  %s323 = scalar_lea.vmem %s0, 6
  %v324 = vld [vmem:[%s323] sm:$0x3]
  %v326 = vlaneseq
  %v327 = vshrl.u32 %v326, 7
  %v328 = vsub.s32 0, %v327
  %v329 = vrot.slane %v324, %v328
  %v330 = vlaneseq
  %v331 = vshrl.u32 %v330, 7
  %v332 = vsub.s32 1, %v331
  %v333 = vrot.slane %v324, %v332
  %v336 = vsub.f32 %v305, %v321
  %v337 = vsub.f32 %v306, %v322
  %v338 = vmul.f32 %v336, %v336
  %v339 = vmul.f32 %v337, %v337
  %v340 = vadd.f32 %v338, 0.0
  %v341 = vadd.f32 %v339, 0.0
  %v342 = vmul.f32 %v340, %v329
  %v343 = vmul.f32 %v341, %v333
  %v344 = vadd.f32 %v342, %v343
  %345 = vadd.xlane.f32.xlu0 %v344
  %v346 = vpop.xlane.xlu0 %345
  %v347 = vrot.slane %v346, 4
  %v348 = vadd.f32 %v346, %v347
  %v349 = vrot.slane %v348, 2
  %v350 = vadd.f32 %v348, %v349
  %v351 = vrot.slane %v350, 1
  %v352 = vadd.f32 %v350, %v351
  %s353 = vtos %v352
  %v354 = vstv %s353
  %s355 = scalar_lea.vmem %s4, 3
  %356 = vst.msk [vmem:[%s355] sm:$0x1] %vm40, %v354
  %v357 = vsub.f32 %v313, %v321
  %v358 = vsub.f32 %v314, %v322
  %v359 = vmul.f32 %v357, %v357
  %v360 = vmul.f32 %v358, %v358
  %v361 = vadd.f32 %v359, 0.0
  %v362 = vadd.f32 %v360, 0.0
  %v363 = vmul.f32 %v361, %v329
  %v364 = vmul.f32 %v362, %v333
  %v365 = vadd.f32 %v363, %v364
  %366 = vadd.xlane.f32.xlu0 %v365
  %v367 = vpop.xlane.xlu0 %366
  %v368 = vrot.slane %v367, 4
  %v369 = vadd.f32 %v367, %v368
  %v370 = vrot.slane %v369, 2
  %v371 = vadd.f32 %v369, %v370
  %v372 = vrot.slane %v371, 1
  %v373 = vadd.f32 %v371, %v372
  %s374 = vtos %v373
  %v375 = vstv %s374
  %s376 = scalar_lea.vmem %s4, 7
  %377 = vst.msk [vmem:[%s376] sm:$0x1] %vm40, %v375
  // Predicated region
  $region18: #{snow_loss.2} parent=0 // pred_check
    _
  $region19: #{snow_loss.2} parent=0 // pred_check_branch
    %379 = sbr.rel (0) target = $region21
  $region20: #{snow_loss.2} parent=0 // pred_region
    _
  $region21: #{snow_loss.2} parent=0 // pred_fallthru
    _
  // Predicated region
  $region22: #{snow_loss.2} parent=0 // pred_check
    _
  $region23: #{snow_loss.2} parent=0 // pred_check_branch
    %381 = sbr.rel (0) target = $region25
  $region24: #{snow_loss.2} parent=0 // pred_region
    _
  $region25: #{snow_loss.2} parent=0 // pred_fallthru
    _

</llo_original>
